<compile_context>
chip_gen: v6e
topology: v6e:2x2x1
jax: 0.10.0
libtpu: 0.0.40
codegen_flags: <defaults>
</compile_context>

<pallas_src>
import jax
import jax.numpy as jnp
from jax.experimental import pallas as pl
from jax.experimental.pallas import tpu as pltpu

EPS = 1e-5

# Packed-parameter slab layout (f32, (64,16); sections sublane-aligned):
#   row   0, cols 0:16 -> BN0 scale s0 (16,)
#   row   1, cols 0:16 -> BN0 shift t0 (16,)
#   rows  8:16, 0:16   -> W1' (8,16)   (BN1 folded)
#   rows 16:24, 0:8    -> W2' (8,8)    (BN2 folded)
#   rows 24:32, 0:8    -> W3' (5,8) zero-padded to (8,8)  (BN3 folded)
#   rows 32:40, col 0  -> b1' (8,)
#   rows 40:48, col 0  -> b2' (8,)
#   rows 48:56, col 0  -> b3' (5,) zero-padded to (8,)
_SLAB_ROWS = 64
_SLAB_COLS = 16

_TB_MAX = 8192   # max batch rows per grid step


def jsc_toy_kernel(x_ref, p_ref, o_ref):
    # x_ref: (TB, 16) natural layout.  o_ref: (TB, 5) natural layout.
    x = x_ref[...]                                   # (TB, 16)

    s0 = p_ref[0:1, 0:16]                            # (1, 16)
    t0 = p_ref[1:2, 0:16]                            # (1, 16)
    w1 = p_ref[8:16, 0:16]                           # (8, 16)
    w2 = p_ref[16:24, 0:8]                           # (8, 8)
    w3 = p_ref[24:32, 0:8]                           # (8, 8), rows 5..7 zero
    b1 = p_ref[32:40, 0:1]                           # (8, 1)
    b2 = p_ref[40:48, 0:1]                           # (8, 1)
    b3 = p_ref[48:56, 0:1]                           # (8, 1), rows 5..7 zero

    # BN0 + ReLU, elementwise in the natural (batch, feature) layout.
    a0 = jnp.maximum(x * s0 + t0, 0.0)               # (TB, 16)

    # Linear(16,8) with BN1 folded: contract the feature axis of both
    # operands -> batch-on-lane output (8, TB).  No explicit input transpose.
    h = jnp.einsum("of,bf->ob", w1, a0, preferred_element_type=jnp.float32)
    h = jnp.maximum(h + b1, 0.0)                      # (8, TB)

    # Linear(8,8) with BN2 folded, + ReLU.
    h = jnp.maximum(jnp.dot(w2, h, preferred_element_type=jnp.float32) + b2, 0.0)
    # Linear(8,5) with BN3 folded (zero-padded to 8 rows), + ReLU.
    h = jnp.maximum(jnp.dot(w3, h, preferred_element_type=jnp.float32) + b3, 0.0)

    # Relayout to natural (batch, feature).  (8, TB) -> (TB, 8) is a
    # sublane/lane-aligned transpose on the otherwise-idle XLU; keep only the
    # 5 real output features (pad rows are exact zeros and are discarded).
    out_nat = jnp.transpose(h)                        # (TB, 8)
    o_ref[...] = out_nat[:, 0:5].astype(o_ref.dtype)


def _round_up(n, m):
    return ((n + m - 1) // m) * m


def fold_and_pack_params(params):
    """Fold eval-mode BatchNorms into the Linears; pack into one (64,16) slab.

    Call this ONCE when parameters are loaded and pass the slab to
    jsc_toy_forward (keeps the folding math out of the per-call path)."""
    (g0, be0, m0, v0,
     w1, b1, g1, be1, m1, v1,
     w2, b2, g2, be2, m2, v2,
     w3, b3, g3, be3, m3, v3) = params

    def bn_affine(g, b, m, v):
        s = g / jnp.sqrt(v + EPS)
        return s, b - m * s

    s0, t0 = bn_affine(g0, be0, m0, v0)
    s1, t1 = bn_affine(g1, be1, m1, v1)
    s2, t2 = bn_affine(g2, be2, m2, v2)
    s3, t3 = bn_affine(g3, be3, m3, v3)

    # y = s*(W@h + b) + t  ==  (s[:,None]*W) @ h + (s*b + t)
    w1f, b1f = s1[:, None] * w1, s1 * b1 + t1   # (8,16), (8,)
    w2f, b2f = s2[:, None] * w2, s2 * b2 + t2   # (8,8),  (8,)
    w3f, b3f = s3[:, None] * w3, s3 * b3 + t3   # (5,8),  (5,)

    slab = jnp.zeros((_SLAB_ROWS, _SLAB_COLS), jnp.float32)
    slab = slab.at[0, 0:16].set(s0)
    slab = slab.at[1, 0:16].set(t0)
    slab = slab.at[8:16, 0:16].set(w1f)
    slab = slab.at[16:24, 0:8].set(w2f)
    slab = slab.at[24:29, 0:8].set(w3f)   # rows 29..31 stay zero
    slab = slab.at[32:40, 0].set(b1f)
    slab = slab.at[40:48, 0].set(b2f)
    slab = slab.at[48:53, 0].set(b3f)     # rows 53..55 stay zero
    return slab


@jax.jit
def jsc_toy_forward(x, slab):
    """x: (B, 16) float32, slab: packed params -> (B, 5) float32 (eval BN)."""
    B, F = x.shape
    assert F == 16
    x = x.astype(jnp.float32)

    # Batch tiling: 128-aligned tiles, capped at _TB_MAX; keep >= 2 blocks
    # when B > 128 so both v7x TensorCores get a share of the grid.
    n_blocks = pl.cdiv(B, _TB_MAX)
    if B > 128:
        n_blocks = max(n_blocks, 2)
    tb = _round_up(pl.cdiv(B, n_blocks), 128)
    grid = (pl.cdiv(B, tb),)

    return pl.pallas_call(
        jsc_toy_kernel,
        out_shape=jax.ShapeDtypeStruct((B, 5), jnp.float32),
        grid=grid,
        in_specs=[
            # Natural-layout x tiles: contiguous HBM DMA, ragged tail masked.
            pl.BlockSpec((tb, 16), lambda i: (i, 0)),
            # Single resident parameter slab (constant index map -> fetched
            # once, not re-DMA'd every grid step).
            pl.BlockSpec((_SLAB_ROWS, _SLAB_COLS), lambda i: (0, 0)),
        ],
        out_specs=pl.BlockSpec((tb, 5), lambda i: (i, 0)),
        compiler_params=pltpu.CompilerParams(
            dimension_semantics=("parallel",),
            # Natural-layout blocks are lane-padded in VMEM; give the pipeline
            # headroom for TB up to 8192 (still far under physical VMEM on
            # v5e/v6e/v7x).
            vmem_limit_bytes=48 * 1024 * 1024,
        ),
    )(x, slab)


def make_raw_params(key):
    """Deterministic synthetic parameters in PyTorch conventions."""
    def bn(key, n):
        k1, k2, k3, k4 = jax.random.split(key, 4)
        gamma = 1.0 + 0.1 * jax.random.normal(k1, (n,), jnp.float32)
        beta = 0.1 * jax.random.normal(k2, (n,), jnp.float32)
        rmean = 0.1 * jax.random.normal(k3, (n,), jnp.float32)
        rvar = 1.0 + 0.1 * jax.random.uniform(k4, (n,), jnp.float32)
        return gamma, beta, rmean, rvar

    def linear(key, n_out, n_in):
        k1, k2 = jax.random.split(key)
        bound = 1.0 / jnp.sqrt(n_in)
        w = jax.random.uniform(k1, (n_out, n_in), jnp.float32, -bound, bound)
        b = jax.random.uniform(k2, (n_out,), jnp.float32, -bound, bound)
        return w, b

    keys = jax.random.split(key, 7)
    g0, be0, m0, v0 = bn(keys[0], 16)
    w1, b1 = linear(keys[1], 8, 16)
    g1, be1, m1, v1 = bn(keys[2], 8)
    w2, b2 = linear(keys[3], 8, 8)
    g2, be2, m2, v2 = bn(keys[4], 8)
    w3, b3 = linear(keys[5], 5, 8)
    g3, be3, m3, v3 = bn(keys[6], 5)
    return (g0, be0, m0, v0, w1, b1, g1, be1, m1, v1,
            w2, b2, g2, be2, m2, v2, w3, b3, g3, be3, m3, v3)


def reference_forward(x, params):
    (g0, be0, m0, v0, w1, b1, g1, be1, m1, v1,
     w2, b2, g2, be2, m2, v2, w3, b3, g3, be3, m3, v3) = params

    def bn(h, g, b, m, v):
        return (h - m) / jnp.sqrt(v + EPS) * g + b

    h = jnp.maximum(bn(x, g0, be0, m0, v0), 0.0)
    h = jnp.maximum(bn(h @ w1.T + b1, g1, be1, m1, v1), 0.0)
    h = jnp.maximum(bn(h @ w2.T + b2, g2, be2, m2, v2), 0.0)
    h = jnp.maximum(bn(h @ w3.T + b3, g3, be3, m3, v3), 0.0)
    return h


if __name__ == "__main__":
    key = jax.random.PRNGKey(0)
    kx, kp, kx2 = jax.random.split(key, 3)
    params = make_raw_params(kp)

    # Fold/pack once, outside the per-call forward (review item 2).
    slab = jax.block_until_ready(fold_and_pack_params(params))

    # Small batch, not a multiple of 128: exercises the ragged-tail masking.
    B = 40
    x = jax.random.normal(kx, (B, 16), jnp.float32)
    out = jax.block_until_ready(jsc_toy_forward(x, slab))
    ref = reference_forward(x, params)
    assert out.shape == (B, 5)
    err = float(jnp.max(jnp.abs(out - ref)))
    assert jnp.allclose(out, ref, atol=1e-4, rtol=1e-4), err

    # Multi-block grid (the >=2-step path used to feed both v7x TensorCores),
    # with a ragged second block.
    B2 = 384
    x2 = jax.random.normal(kx2, (B2, 16), jnp.float32)
    out2 = jax.block_until_ready(jsc_toy_forward(x2, slab))
    ref2 = reference_forward(x2, params)
    assert out2.shape == (B2, 5)
    err2 = float(jnp.max(jnp.abs(out2 - ref2)))
    assert jnp.allclose(out2, ref2, atol=1e-4, rtol=1e-4), err2

    print("KERNEL_OK")
</pallas_src>

<mosaic_0001>
module attributes {stable_mosaic.version = 11 : i64} {
  func.func @jsc_toy_kernel(%arg0: i32, %arg1: memref<128x16xf32, #tpu.memory_space<vmem>>, %arg2: memref<64x16xf32, #tpu.memory_space<vmem>>, %arg3: memref<128x5xf32, #tpu.memory_space<vmem>>) attributes {dimension_semantics = [#tpu.dimension_semantics<parallel>], iteration_bounds = array<i64: 1>, scalar_prefetch = 0 : i64, scratch_operands = 0 : i64, tpu.core_type = #tpu.core_type<tc>, window_params = [{transform_indices = @transform_0, window_bounds = array<i64: 128, 16>}, {pipeline_mode = #tpu.pipeline_mode<synchronous>, transform_indices = @transform_1, window_bounds = array<i64: 64, 16>}, {transform_indices = @transform_2, window_bounds = array<i64: 128, 5>}]} {
    %c0 = arith.constant 0 : index
    %c0_0 = arith.constant 0 : index
    %0 = vector.load %arg1[%c0, %c0_0] : memref<128x16xf32, #tpu.memory_space<vmem>>, vector<128x16xf32>
    %c0_1 = arith.constant 0 : index
    %c0_2 = arith.constant 0 : index
    %1 = vector.load %arg2[%c0_1, %c0_2] : memref<64x16xf32, #tpu.memory_space<vmem>>, vector<1x16xf32>
    %c1 = arith.constant 1 : index
    %c0_3 = arith.constant 0 : index
    %2 = vector.load %arg2[%c1, %c0_3] : memref<64x16xf32, #tpu.memory_space<vmem>>, vector<1x16xf32>
    %c8 = arith.constant 8 : index
    %c0_4 = arith.constant 0 : index
    %3 = vector.load %arg2[%c8, %c0_4] : memref<64x16xf32, #tpu.memory_space<vmem>>, vector<8x16xf32>
    %c16 = arith.constant 16 : index
    %c0_5 = arith.constant 0 : index
    %4 = vector.load %arg2[%c16, %c0_5] : memref<64x16xf32, #tpu.memory_space<vmem>>, vector<8x8xf32>
    %c24 = arith.constant 24 : index
    %c0_6 = arith.constant 0 : index
    %5 = vector.load %arg2[%c24, %c0_6] : memref<64x16xf32, #tpu.memory_space<vmem>>, vector<8x8xf32>
    %c32 = arith.constant 32 : index
    %c0_7 = arith.constant 0 : index
    %6 = vector.load %arg2[%c32, %c0_7] : memref<64x16xf32, #tpu.memory_space<vmem>>, vector<8x1xf32>
    %c40 = arith.constant 40 : index
    %c0_8 = arith.constant 0 : index
    %7 = vector.load %arg2[%c40, %c0_8] : memref<64x16xf32, #tpu.memory_space<vmem>>, vector<8x1xf32>
    %c48 = arith.constant 48 : index
    %c0_9 = arith.constant 0 : index
    %8 = vector.load %arg2[%c48, %c0_9] : memref<64x16xf32, #tpu.memory_space<vmem>>, vector<8x1xf32>
    %9 = vector.broadcast %1 : vector<1x16xf32> to vector<128x16xf32>
    %10 = arith.mulf %0, %9 : vector<128x16xf32>
    %11 = vector.broadcast %2 : vector<1x16xf32> to vector<128x16xf32>
    %12 = arith.addf %10, %11 : vector<128x16xf32>
    %cst = arith.constant 0.000000e+00 : f32
    %13 = vector.broadcast %cst : f32 to vector<128x16xf32>
    %14 = arith.maximumf %12, %13 : vector<128x16xf32>
    "tpu.trace_start"() <{level = 10 : i32, message = "of,bf->ob"}> : () -> ()
    %cst_10 = arith.constant dense<0.000000e+00> : vector<8x128xf32>
    %15 = tpu.matmul %3, %14, %cst_10 {dimension_numbers = #tpu.dot_dimension_numbers<[1], [1], [0], [0], [0, 0, 1, 0], [], []>} : vector<8x16xf32>, vector<128x16xf32>, vector<8x128xf32> -> vector<8x128xf32>
    "tpu.trace_stop"() : () -> ()
    %16 = vector.broadcast %6 : vector<8x1xf32> to vector<8x128xf32>
    %17 = arith.addf %15, %16 : vector<8x128xf32>
    %cst_11 = arith.constant 0.000000e+00 : f32
    %18 = vector.broadcast %cst_11 : f32 to vector<8x128xf32>
    %19 = arith.maximumf %17, %18 : vector<8x128xf32>
    %cst_12 = arith.constant dense<0.000000e+00> : vector<8x128xf32>
    %20 = tpu.matmul %4, %19, %cst_12 {dimension_numbers = #tpu.dot_dimension_numbers<[1], [0], [0], [1], [0, 0, 1, 1], [], []>} : vector<8x8xf32>, vector<8x128xf32>, vector<8x128xf32> -> vector<8x128xf32>
    %21 = vector.broadcast %7 : vector<8x1xf32> to vector<8x128xf32>
    %22 = arith.addf %20, %21 : vector<8x128xf32>
    %cst_13 = arith.constant 0.000000e+00 : f32
    %23 = vector.broadcast %cst_13 : f32 to vector<8x128xf32>
    %24 = arith.maximumf %22, %23 : vector<8x128xf32>
    %cst_14 = arith.constant dense<0.000000e+00> : vector<8x128xf32>
    %25 = tpu.matmul %5, %24, %cst_14 {dimension_numbers = #tpu.dot_dimension_numbers<[1], [0], [0], [1], [0, 0, 1, 1], [], []>} : vector<8x8xf32>, vector<8x128xf32>, vector<8x128xf32> -> vector<8x128xf32>
    %26 = vector.broadcast %8 : vector<8x1xf32> to vector<8x128xf32>
    %27 = arith.addf %25, %26 : vector<8x128xf32>
    %cst_15 = arith.constant 0.000000e+00 : f32
    %28 = vector.broadcast %cst_15 : f32 to vector<8x128xf32>
    %29 = arith.maximumf %27, %28 : vector<8x128xf32>
    %30 = tpu.transpose %29, [1, 0] : vector<8x128xf32> -> vector<128x8xf32>
    %31 = vector.extract_strided_slice %30 {offsets = [0, 0], sizes = [128, 5], strides = [1, 1]} : vector<128x8xf32> to vector<128x5xf32>
    %c0_16 = arith.constant 0 : index
    %c0_17 = arith.constant 0 : index
    %32 = vector.load %arg3[%c0_16, %c0_17] : memref<128x5xf32, #tpu.memory_space<vmem>>, vector<128x5xf32>
    tpu.vector_store %arg3[%c0_16, %c0_17], %31 {strides = array<i32>} : memref<128x5xf32, #tpu.memory_space<vmem>>, vector<128x5xf32>,
    return
  }
  func.func @transform_0(%arg0: i32) -> (i32, i32) {
    %c0_i32 = arith.constant 0 : i32
    %c0_i32_0 = arith.constant 0 : i32
    return %arg0, %c0_i32 : i32, i32
  }
  func.func @transform_1(%arg0: i32) -> (i32, i32) {
    %c0_i32 = arith.constant 0 : i32
    %c0_i32_0 = arith.constant 0 : i32
    %c0_i32_1 = arith.constant 0 : i32
    return %c0_i32, %c0_i32_0 : i32, i32
  }
  func.func @transform_2(%arg0: i32) -> (i32, i32) {
    %c0_i32 = arith.constant 0 : i32
    %c0_i32_0 = arith.constant 0 : i32
    return %arg0, %c0_i32 : i32, i32
  }
}

</mosaic_0001>

<llo_original>
// kernel: jsc_toy_forward.1
$region0: #{jsc_toy_forward.1}
  #allocation0 [shape = 'u32[]', space=smem, size = 0x4, offset = 0x4, fixed_abs, tag = 'smem constant byte address 0x4 - core index']
  #allocation1 [shape = 'u32[144,128]{1,0:T(1,128)}', space=vmem, size = 0x12000, scoped, tag = 'internal scratch']
  %s0 = inlined_call_operand.vmem [shape: f32[40,16], index: 0, kind: input, shape index: {}]
  %s1 = inlined_call_operand.vmem [shape: f32[64,16], index: 1, kind: input, shape index: {}]
  %s2 = inlined_call_operand.vmem [shape: f32[40,5], index: 2, kind: output, shape index: {}]
  %s3 = sld [smem:[#allocation0]]
  $region52: #{jsc_toy_forward.1} parent=0
    _
  %s5 = ssub.s32 1, %s3
  %s6 = scalar_select 0, %s5, %s3
  $region1: #{jsc_toy_forward.1} parent=0
    #allocation2 [shape = 'u8[65536]{0}', space=vmem, size = 0x10000, scoped, tag = 'output window, operand 0, single buffered']
    // Predicated region
    $region2: #{jsc_toy_forward.1} parent=1 // pred_check
      _
    $region3: #{jsc_toy_forward.1} parent=1 // pred_check_branch
      %8 = sbr.rel (0) target = $region5
    $region4: #{jsc_toy_forward.1} parent=1 // pred_region
      _
    $region5: #{jsc_toy_forward.1} parent=1 // pred_fallthru
      _
    // Predicated region
    $region6: #{jsc_toy_forward.1} parent=1 // pred_check
      _
    $region7: #{jsc_toy_forward.1} parent=1 // pred_check_branch
      %10 = sbr.rel (0) target = $region9
    $region8: #{jsc_toy_forward.1} parent=1 // pred_region
      _
    $region9: #{jsc_toy_forward.1} parent=1 // pred_fallthru
      _
    %v11 = vld [vmem:[%s0] sm:$0xff]
    %v12 = vld [vmem:[%s0 + $0x8] sm:$0xff]
    %v13 = vld [vmem:[%s0 + $0x10] sm:$0xff]
    %v14 = vld [vmem:[%s0 + $0x18] sm:$0xff]
    %v15 = vld [vmem:[%s0 + $0x20] sm:$0xff]
    %v16 = vld [vmem:[%s0 + $0x28] sm:$0xff]
    %v17 = vld [vmem:[%s0 + $0x30] sm:$0xff]
    %v18 = vld [vmem:[%s0 + $0x38] sm:$0xff]
    %v19 = vld [vmem:[%s0 + $0x40] sm:$0xff]
    %v20 = vld [vmem:[%s0 + $0x48] sm:$0xff]
    %v21 = vld [vmem:[%s0 + $0x50] sm:$0xff]
    %v22 = vld [vmem:[%s0 + $0x58] sm:$0xff]
    %v23 = vld [vmem:[%s0 + $0x60] sm:$0xff]
    %v24 = vld [vmem:[%s0 + $0x68] sm:$0xff]
    %v25 = vld [vmem:[%s0 + $0x70] sm:$0xff]
    %v26 = vld [vmem:[%s0 + $0x78] sm:$0xff]
    %v27 = vld [vmem:[%s1] sm:$0x1]
    %v28 = vld [vmem:[%s1 + $0x1] sm:$0x1]
    %v29 = vld [vmem:[%s1 + $0x8] sm:$0xff]
    %v30 = vld [vmem:[%s1 + $0x10] sm:$0xff]
    %v31 = vld [vmem:[%s1 + $0x18] sm:$0xff]
    %v32 = vld [vmem:[%s1 + $0x20] sm:$0xff]
    %v33 = vld [vmem:[%s1 + $0x28] sm:$0xff]
    %v34 = vld [vmem:[%s1 + $0x30] sm:$0xff]
    %v35 = vlaneseq
    %v36 = vshrl.u32 %v35, 7
    %v37 = vsub.s32 0, %v36
    %v38 = vrot.slane %v27, %v37
    %v39 = vmul.f32 %v11, %v38
    %v40 = vmul.f32 %v12, %v38
    %v41 = vmul.f32 %v13, %v38
    %v42 = vmul.f32 %v14, %v38
    %v43 = vmul.f32 %v15, %v38
    %v44 = vmul.f32 %v16, %v38
    %v45 = vmul.f32 %v17, %v38
    %v46 = vmul.f32 %v18, %v38
    %v47 = vmul.f32 %v19, %v38
    %v48 = vmul.f32 %v20, %v38
    %v49 = vmul.f32 %v21, %v38
    %v50 = vmul.f32 %v22, %v38
    %v51 = vmul.f32 %v23, %v38
    %v52 = vmul.f32 %v24, %v38
    %v53 = vmul.f32 %v25, %v38
    %v54 = vmul.f32 %v26, %v38
    %v55 = vlaneseq
    %v56 = vshrl.u32 %v55, 7
    %v57 = vsub.s32 0, %v56
    %v58 = vrot.slane %v28, %v57
    %v59 = vadd.f32 %v39, %v58
    %v60 = vadd.f32 %v40, %v58
    %v61 = vadd.f32 %v41, %v58
    %v62 = vadd.f32 %v42, %v58
    %v63 = vadd.f32 %v43, %v58
    %v64 = vadd.f32 %v44, %v58
    %v65 = vadd.f32 %v45, %v58
    %v66 = vadd.f32 %v46, %v58
    %v67 = vadd.f32 %v47, %v58
    %v68 = vadd.f32 %v48, %v58
    %v69 = vadd.f32 %v49, %v58
    %v70 = vadd.f32 %v50, %v58
    %v71 = vadd.f32 %v51, %v58
    %v72 = vadd.f32 %v52, %v58
    %v73 = vadd.f32 %v53, %v58
    %v74 = vadd.f32 %v54, %v58
    %v75 = vmax.f32 %v59, 0.0
    %v76 = vmax.f32 %v60, 0.0
    %v77 = vmax.f32 %v61, 0.0
    %v78 = vmax.f32 %v62, 0.0
    %v79 = vmax.f32 %v63, 0.0
    %v80 = vmax.f32 %v64, 0.0
    %v81 = vmax.f32 %v65, 0.0
    %v82 = vmax.f32 %v66, 0.0
    %v83 = vmax.f32 %v67, 0.0
    %v84 = vmax.f32 %v68, 0.0
    %v85 = vmax.f32 %v69, 0.0
    %v86 = vmax.f32 %v70, 0.0
    %v87 = vmax.f32 %v71, 0.0
    %v88 = vmax.f32 %v72, 0.0
    %v89 = vmax.f32 %v73, 0.0
    %v90 = vmax.f32 %v74, 0.0
    %92 = vset.pattern.permute.xlu0 0
    %93 = vperm.xlu0 %92, %v32
    %v94 = vpop.permute.xlu0 %93
    %vm96 = vcmask 130048
    %v98 = vsel %vm96, %v29, 0
    %v101 = vsel %vm96, %v75, 0
    %v104 = vsel %vm96, %v76, 0
    %v107 = vsel %vm96, %v77, 0
    %v110 = vsel %vm96, %v78, 0
    %v113 = vsel %vm96, %v79, 0
    %v116 = vsel %vm96, %v80, 0
    %v119 = vsel %vm96, %v81, 0
    %v122 = vsel %vm96, %v82, 0
    %v125 = vsel %vm96, %v83, 0
    %v128 = vsel %vm96, %v84, 0
    %v131 = vsel %vm96, %v85, 0
    %v134 = vsel %vm96, %v86, 0
    %v137 = vsel %vm96, %v87, 0
    %v140 = vsel %vm96, %v88, 0
    %v143 = vsel %vm96, %v89, 0
    %v146 = vsel %vm96, %v90, 0
    %148 = vmatprep.subr.mxu0 0.0
    %149 = vmatpush1.xpose.msra.mxu0 %v146
    %150 = vmatprep.subr.mxu0 0.0
    %151 = vmatpush1.xpose.msra.mxu0 %v143
    %152 = vmatprep.subr.mxu0 0.0
    %153 = vmatpush1.xpose.msra.mxu0 %v140
    %154 = vmatprep.subr.mxu0 0.0
    %155 = vmatpush1.xpose.msra.mxu0 %v137
    %156 = vmatprep.subr.mxu0 0.0
    %157 = vmatpush1.xpose.msra.mxu0 %v134
    %158 = vmatprep.subr.mxu0 0.0
    %159 = vmatpush1.xpose.msra.mxu0 %v131
    %160 = vmatprep.subr.mxu0 0.0
    %161 = vmatpush1.xpose.msra.mxu0 %v128
    %162 = vmatprep.subr.mxu0 0.0
    %163 = vmatpush1.xpose.msra.mxu0 %v125
    %164 = vmatprep.subr.mxu0 0.0
    %165 = vmatpush1.xpose.msra.mxu0 %v122
    %166 = vmatprep.subr.mxu0 0.0
    %167 = vmatpush1.xpose.msra.mxu0 %v119
    %168 = vmatprep.subr.mxu0 0.0
    %169 = vmatpush1.xpose.msra.mxu0 %v116
    %170 = vmatprep.subr.mxu0 0.0
    %171 = vmatpush1.xpose.msra.mxu0 %v113
    %172 = vmatprep.subr.mxu0 0.0
    %173 = vmatpush1.xpose.msra.mxu0 %v110
    %174 = vmatprep.subr.mxu0 0.0
    %175 = vmatpush1.xpose.msra.mxu0 %v107
    %176 = vmatprep.subr.mxu0 0.0
    %177 = vmatpush1.xpose.msra.mxu0 %v104
    %178 = vmatprep.subr.mxu0 0.0
    %179 = vmatpush1.xpose.msra.mxu0 %v101
    %180 = vmatprep.subr.mxu0 0.0
    %181 = vmatpush2.xpose.msra.mxu0 0.0
    %182 = vmatprep.subr.mxu0 0.0
    %183 = vmatpush2.xpose.msra.mxu0 0.0
    %184 = vmatprep.subr.mxu0 0.0
    %185 = vmatpush2.xpose.msra.mxu0 0.0
    %186 = vmatprep.subr.mxu0 0.0
    %187 = vmatpush2.xpose.msra.mxu0 0.0
    %188 = vmatprep.subr.mxu0 0.0
    %189 = vmatpush2.xpose.msra.mxu0 0.0
    %190 = vmatprep.subr.mxu0 0.0
    %191 = vmatpush2.xpose.msra.mxu0 0.0
    %192 = vmatprep.subr.mxu0 0.0
    %193 = vmatpush2.xpose.msra.mxu0 0.0
    %194 = vmatprep.subr.mxu0 0.0
    %195 = vmatpush2.xpose.msra.mxu0 0.0
    %196 = vmatprep.subr.mxu0 0.0
    %197 = vmatpush2.xpose.msra.mxu0 0.0
    %198 = vmatprep.subr.mxu0 0.0
    %199 = vmatpush2.xpose.msra.mxu0 0.0
    %200 = vmatprep.subr.mxu0 0.0
    %201 = vmatpush2.xpose.msra.mxu0 0.0
    %202 = vmatprep.subr.mxu0 0.0
    %203 = vmatpush2.xpose.msra.mxu0 0.0
    %204 = vmatprep.subr.mxu0 0.0
    %205 = vmatpush2.xpose.msra.mxu0 0.0
    %206 = vmatprep.subr.mxu0 0.0
    %207 = vmatpush2.xpose.msra.mxu0 0.0
    %208 = vmatprep.subr.mxu0 0.0
    %209 = vmatpush2.xpose.msra.mxu0 0.0
    %210 = vmatprep.subr.mxu0 0.0
    %211 = vmatpush2.xpose.msra.mxu0 0.0
    %212 = vmatprep.mubr.f32.mxu0 0.0
    %213 = vmatmul.mubr.f32.gmra.mxu0 %v98
    %v214 = vpop.f32.mrf.mxu0
    %v215 = vadd.f32 %v94, %v214
    %v216 = vpop.f32.mrf.mxu0
    %217 = vdwg.mxu0
    %v218 = vmax.f32 %v215, 0.0
    %220 = vset.pattern.permute.xlu0 0
    %221 = vperm.xlu0 %220, %v33
    %v222 = vpop.permute.xlu0 %221
    %vm224 = vcmask 64512
    %v226 = vsel %vm224, %v30, 0
    %228 = vmatprep.subr.mxu0 0.0
    %229 = vmatpush1.msra.mxu0 0.0
    %230 = vmatprep.subr.mxu0 0.0
    %231 = vmatpush1.msra.mxu0 0.0
    %232 = vmatprep.subr.mxu0 0.0
    %233 = vmatpush1.msra.mxu0 0.0
    %234 = vmatprep.subr.mxu0 0.0
    %235 = vmatpush1.msra.mxu0 0.0
    %236 = vmatprep.subr.mxu0 0.0
    %237 = vmatpush1.msra.mxu0 0.0
    %238 = vmatprep.subr.mxu0 0.0
    %239 = vmatpush1.msra.mxu0 0.0
    %240 = vmatprep.subr.mxu0 0.0
    %241 = vmatpush1.msra.mxu0 0.0
    %242 = vmatprep.subr.mxu0 0.0
    %243 = vmatpush1.msra.mxu0 0.0
    %244 = vmatprep.subr.mxu0 0.0
    %245 = vmatpush1.msra.mxu0 0.0
    %246 = vmatprep.subr.mxu0 0.0
    %247 = vmatpush1.msra.mxu0 0.0
    %248 = vmatprep.subr.mxu0 0.0
    %249 = vmatpush1.msra.mxu0 0.0
    %250 = vmatprep.subr.mxu0 0.0
    %251 = vmatpush1.msra.mxu0 0.0
    %252 = vmatprep.subr.mxu0 0.0
    %253 = vmatpush1.msra.mxu0 0.0
    %254 = vmatprep.subr.mxu0 0.0
    %255 = vmatpush1.msra.mxu0 0.0
    %256 = vmatprep.subr.mxu0 0.0
    %257 = vmatpush1.msra.mxu0 0.0
    %258 = vmatprep.subr.mxu0 0.0
    %259 = vmatpush1.msra.mxu0 %v218
    %260 = vmatprep.subr.mxu0 0.0
    %261 = vmatpush2.msra.mxu0 0.0
    %262 = vmatprep.subr.mxu0 0.0
    %263 = vmatpush2.msra.mxu0 0.0
    %264 = vmatprep.subr.mxu0 0.0
    %265 = vmatpush2.msra.mxu0 0.0
    %266 = vmatprep.subr.mxu0 0.0
    %267 = vmatpush2.msra.mxu0 0.0
    %268 = vmatprep.subr.mxu0 0.0
    %269 = vmatpush2.msra.mxu0 0.0
    %270 = vmatprep.subr.mxu0 0.0
    %271 = vmatpush2.msra.mxu0 0.0
    %272 = vmatprep.subr.mxu0 0.0
    %273 = vmatpush2.msra.mxu0 0.0
    %274 = vmatprep.subr.mxu0 0.0
    %275 = vmatpush2.msra.mxu0 0.0
    %276 = vmatprep.subr.mxu0 0.0
    %277 = vmatpush2.msra.mxu0 0.0
    %278 = vmatprep.subr.mxu0 0.0
    %279 = vmatpush2.msra.mxu0 0.0
    %280 = vmatprep.subr.mxu0 0.0
    %281 = vmatpush2.msra.mxu0 0.0
    %282 = vmatprep.subr.mxu0 0.0
    %283 = vmatpush2.msra.mxu0 0.0
    %284 = vmatprep.subr.mxu0 0.0
    %285 = vmatpush2.msra.mxu0 0.0
    %286 = vmatprep.subr.mxu0 0.0
    %287 = vmatpush2.msra.mxu0 0.0
    %288 = vmatprep.subr.mxu0 0.0
    %289 = vmatpush2.msra.mxu0 0.0
    %290 = vmatprep.subr.mxu0 0.0
    %291 = vmatpush2.msra.mxu0 0.0
    %292 = vmatprep.mubr.f32.mxu0 0.0
    %293 = vmatmul.mubr.f32.gmra.mxu0 %v226
    %v294 = vpop.f32.mrf.mxu0
    %v295 = vadd.f32 %v222, %v294
    %v296 = vpop.f32.mrf.mxu0
    %297 = vdwg.mxu0
    %v298 = vmax.f32 %v295, 0.0
    %300 = vset.pattern.permute.xlu0 0
    %301 = vperm.xlu0 %300, %v34
    %v302 = vpop.permute.xlu0 %301
    %v305 = vsel %vm224, %v31, 0
    %307 = vmatprep.subr.mxu0 0.0
    %308 = vmatpush1.msra.mxu0 0.0
    %309 = vmatprep.subr.mxu0 0.0
    %310 = vmatpush1.msra.mxu0 0.0
    %311 = vmatprep.subr.mxu0 0.0
    %312 = vmatpush1.msra.mxu0 0.0
    %313 = vmatprep.subr.mxu0 0.0
    %314 = vmatpush1.msra.mxu0 0.0
    %315 = vmatprep.subr.mxu0 0.0
    %316 = vmatpush1.msra.mxu0 0.0
    %317 = vmatprep.subr.mxu0 0.0
    %318 = vmatpush1.msra.mxu0 0.0
    %319 = vmatprep.subr.mxu0 0.0
    %320 = vmatpush1.msra.mxu0 0.0
    %321 = vmatprep.subr.mxu0 0.0
    %322 = vmatpush1.msra.mxu0 0.0
    %323 = vmatprep.subr.mxu0 0.0
    %324 = vmatpush1.msra.mxu0 0.0
    %325 = vmatprep.subr.mxu0 0.0
    %326 = vmatpush1.msra.mxu0 0.0
    %327 = vmatprep.subr.mxu0 0.0
    %328 = vmatpush1.msra.mxu0 0.0
    %329 = vmatprep.subr.mxu0 0.0
    %330 = vmatpush1.msra.mxu0 0.0
    %331 = vmatprep.subr.mxu0 0.0
    %332 = vmatpush1.msra.mxu0 0.0
    %333 = vmatprep.subr.mxu0 0.0
    %334 = vmatpush1.msra.mxu0 0.0
    %335 = vmatprep.subr.mxu0 0.0
    %336 = vmatpush1.msra.mxu0 0.0
    %337 = vmatprep.subr.mxu0 0.0
    %338 = vmatpush1.msra.mxu0 %v298
    %339 = vmatprep.subr.mxu0 0.0
    %340 = vmatpush2.msra.mxu0 0.0
    %341 = vmatprep.subr.mxu0 0.0
    %342 = vmatpush2.msra.mxu0 0.0
    %343 = vmatprep.subr.mxu0 0.0
    %344 = vmatpush2.msra.mxu0 0.0
    %345 = vmatprep.subr.mxu0 0.0
    %346 = vmatpush2.msra.mxu0 0.0
    %347 = vmatprep.subr.mxu0 0.0
    %348 = vmatpush2.msra.mxu0 0.0
    %349 = vmatprep.subr.mxu0 0.0
    %350 = vmatpush2.msra.mxu0 0.0
    %351 = vmatprep.subr.mxu0 0.0
    %352 = vmatpush2.msra.mxu0 0.0
    %353 = vmatprep.subr.mxu0 0.0
    %354 = vmatpush2.msra.mxu0 0.0
    %355 = vmatprep.subr.mxu0 0.0
    %356 = vmatpush2.msra.mxu0 0.0
    %357 = vmatprep.subr.mxu0 0.0
    %358 = vmatpush2.msra.mxu0 0.0
    %359 = vmatprep.subr.mxu0 0.0
    %360 = vmatpush2.msra.mxu0 0.0
    %361 = vmatprep.subr.mxu0 0.0
    %362 = vmatpush2.msra.mxu0 0.0
    %363 = vmatprep.subr.mxu0 0.0
    %364 = vmatpush2.msra.mxu0 0.0
    %365 = vmatprep.subr.mxu0 0.0
    %366 = vmatpush2.msra.mxu0 0.0
    %367 = vmatprep.subr.mxu0 0.0
    %368 = vmatpush2.msra.mxu0 0.0
    %369 = vmatprep.subr.mxu0 0.0
    %370 = vmatpush2.msra.mxu0 0.0
    %371 = vmatprep.mubr.f32.mxu0 0.0
    %372 = vmatmul.mubr.f32.gmra.mxu0 %v305
    %v373 = vpop.f32.mrf.mxu0
    %v374 = vadd.f32 %v302, %v373
    %v375 = vpop.f32.mrf.mxu0
    %376 = vdwg.mxu0
    %v377 = vmax.f32 %v374, 0.0
    %378 = vxpose.xlu0.b32.start [1/16] %v377, 128
    %379 = vxpose.xlu0.b32.cont [2/16] 0.0, 128
    %380 = vxpose.xlu0.b32.cont [3/16] 0.0, 128
    %381 = vxpose.xlu0.b32.cont [4/16] 0.0, 128
    %382 = vxpose.xlu0.b32.cont [5/16] 0.0, 128
    %383 = vxpose.xlu0.b32.cont [6/16] 0.0, 128
    %384 = vxpose.xlu0.b32.cont [7/16] 0.0, 128
    %385 = vxpose.xlu0.b32.cont [8/16] 0.0, 128
    %386 = vxpose.xlu0.b32.cont [9/16] 0.0, 128
    %387 = vxpose.xlu0.b32.cont [10/16] 0.0, 128
    %388 = vxpose.xlu0.b32.cont [11/16] 0.0, 128
    %389 = vxpose.xlu0.b32.cont [12/16] 0.0, 128
    %390 = vxpose.xlu0.b32.cont [13/16] 0.0, 128
    %391 = vxpose.xlu0.b32.cont [14/16] 0.0, 128
    %392 = vxpose.xlu0.b32.cont [15/16] 0.0, 128
    %393 = vxpose.xlu0.b32.end [16/16] 0.0, 128
    %v394 = vpop.trf.xlu0
    %v395 = vpop.trf.xlu0
    %v396 = vpop.trf.xlu0
    %v397 = vpop.trf.xlu0
    %v398 = vpop.trf.xlu0
    %v399 = vpop.trf.xlu0
    %v400 = vpop.trf.xlu0
    %v401 = vpop.trf.xlu0
    %v402 = vpop.trf.xlu0
    %v403 = vpop.trf.xlu0
    %v404 = vpop.trf.xlu0
    %v405 = vpop.trf.xlu0
    %v406 = vpop.trf.xlu0
    %v407 = vpop.trf.xlu0
    %v408 = vpop.trf.xlu0
    %v409 = vpop.trf.xlu0
    %vm410 = vcmask 39936
    %411 = vst.msk [vmem:[#allocation2] sm:$0xff] %vm410, %v394
    %412 = vst.msk [vmem:[#allocation2 + $0x8] sm:$0xff] %vm410, %v395
    %413 = vst.msk [vmem:[#allocation2 + $0x10] sm:$0xff] %vm410, %v396
    %414 = vst.msk [vmem:[#allocation2 + $0x18] sm:$0xff] %vm410, %v397
    %415 = vst.msk [vmem:[#allocation2 + $0x20] sm:$0xff] %vm410, %v398
    %416 = vst.msk [vmem:[#allocation2 + $0x28] sm:$0xff] %vm410, %v399
    %417 = vst.msk [vmem:[#allocation2 + $0x30] sm:$0xff] %vm410, %v400
    %418 = vst.msk [vmem:[#allocation2 + $0x38] sm:$0xff] %vm410, %v401
    %419 = vst.msk [vmem:[#allocation2 + $0x40] sm:$0xff] %vm410, %v402
    %420 = vst.msk [vmem:[#allocation2 + $0x48] sm:$0xff] %vm410, %v403
    %421 = vst.msk [vmem:[#allocation2 + $0x50] sm:$0xff] %vm410, %v404
    %422 = vst.msk [vmem:[#allocation2 + $0x58] sm:$0xff] %vm410, %v405
    %423 = vst.msk [vmem:[#allocation2 + $0x60] sm:$0xff] %vm410, %v406
    %424 = vst.msk [vmem:[#allocation2 + $0x68] sm:$0xff] %vm410, %v407
    %425 = vst.msk [vmem:[#allocation2 + $0x70] sm:$0xff] %vm410, %v408
    %426 = vst.msk [vmem:[#allocation2 + $0x78] sm:$0xff] %vm410, %v409
    // Predicated region
    $region10: #{jsc_toy_forward.1} parent=1 // pred_check
      _
    $region11: #{jsc_toy_forward.1} parent=1 // pred_check_branch
      %428 = sbr.rel (0) target = $region13
    $region12: #{jsc_toy_forward.1} parent=1 // pred_region
      // Predicated region
      $region14: #{jsc_toy_forward.1} parent=12 // pred_check
        _
      $region15: #{jsc_toy_forward.1} parent=12 // pred_check_branch
        %430 = sbr.rel (0) target = $region17
      $region16: #{jsc_toy_forward.1} parent=12 // pred_region
        // Predicated region
        $region18: #{jsc_toy_forward.1} parent=16 // pred_check
          _
        $region19: #{jsc_toy_forward.1} parent=16 // pred_check_branch
          %432 = sbr.rel (0) target = $region21
        $region20: #{jsc_toy_forward.1} parent=16 // pred_region
          // Predicated region
          $region33: #{jsc_toy_forward.1} parent=20 // pred_check
            _
          $region34: #{jsc_toy_forward.1} parent=20 // pred_check_branch
            %456 = sbr.rel (0) target = $region36
          $region35: #{jsc_toy_forward.1} parent=20 // pred_region
            loop: start=0, step=1, limit=1
            $region37: #{jsc_toy_forward.1} parent=35 // loop_pre_header
              _
            $region38: #{jsc_toy_forward.1} parent=35 // loop_header
              %s458 = sphi 0, %s462
              %p459 = scmp.ge.s32.totalorder %s458, 1
              %s463 = sphi [#allocation2], [#allocation2]
              %s464 = sphi %s2, %s2
            $region39: #{jsc_toy_forward.1} parent=35 // loop_header_branch
              %461 = sbr.rel (%p459) target = $region43
            $region40: #{jsc_toy_forward.1} parent=35 // loop_body
              %v465 = vld [vmem:[%s463] sm:$0xff]
              %466 = vst [vmem:[%s464] sm:$0xff] %v465
              %v467 = vld [vmem:[%s463 + $0x8] sm:$0xff]
              %468 = vst [vmem:[%s464 + $0x8] sm:$0xff] %v467
              %v469 = vld [vmem:[%s463 + $0x10] sm:$0xff]
              %470 = vst [vmem:[%s464 + $0x10] sm:$0xff] %v469
              %v471 = vld [vmem:[%s463 + $0x18] sm:$0xff]
              %472 = vst [vmem:[%s464 + $0x18] sm:$0xff] %v471
              %v473 = vld [vmem:[%s463 + $0x20] sm:$0xff]
              %474 = vst [vmem:[%s464 + $0x20] sm:$0xff] %v473
            $region41: #{jsc_toy_forward.1} parent=35 // loop_footer
              %s462 = sadd.s32 1, %s458
            $region42: #{jsc_toy_forward.1} parent=35 // loop_footer_branch
              %457 = sbr.rel target = $region38
            $region43: #{jsc_toy_forward.1} parent=35 // loop_exit
              _
          $region36: #{jsc_toy_forward.1} parent=20 // pred_fallthru
            _
          // Predicated region
          $region44: #{jsc_toy_forward.1} parent=20 // pred_check
            _
          $region45: #{jsc_toy_forward.1} parent=20 // pred_check_branch
            %476 = sbr.rel target = $region47
          $region46: #{jsc_toy_forward.1} parent=20 // pred_region
            _
          $region47: #{jsc_toy_forward.1} parent=20 // pred_fallthru
            _
        $region21: #{jsc_toy_forward.1} parent=16 // pred_fallthru
          _
        // Predicated region
        $region22: #{jsc_toy_forward.1} parent=16 // pred_check
          _
        $region23: #{jsc_toy_forward.1} parent=16 // pred_check_branch
          %434 = sbr.rel target = $region25
        $region24: #{jsc_toy_forward.1} parent=16 // pred_region
          %s436 = ssub.s32 256, 1
          loop: start=0, step=1, limit=1
          $region26: #{jsc_toy_forward.1} parent=24 // loop_pre_header
            _
          $region27: #{jsc_toy_forward.1} parent=24 // loop_header
            %s438 = sphi 0, %s442
            %p439 = scmp.ge.s32.totalorder %s438, 1
            %s443 = sphi [#allocation2], [#allocation2]
            %s444 = sphi %s2, %s2
          $region28: #{jsc_toy_forward.1} parent=24 // loop_header_branch
            %441 = sbr.rel (%p439) target = $region32
          $region29: #{jsc_toy_forward.1} parent=24 // loop_body
            %v445 = vld [vmem:[%s443] sm:%s436]
            %446 = vst [vmem:[%s444] sm:%s436] %v445
            %v447 = vld [vmem:[%s443 + $0x8] sm:%s436]
            %448 = vst [vmem:[%s444 + $0x8] sm:%s436] %v447
            %v449 = vld [vmem:[%s443 + $0x10] sm:%s436]
            %450 = vst [vmem:[%s444 + $0x10] sm:%s436] %v449
            %v451 = vld [vmem:[%s443 + $0x18] sm:%s436]
            %452 = vst [vmem:[%s444 + $0x18] sm:%s436] %v451
            %v453 = vld [vmem:[%s443 + $0x20] sm:%s436]
            %454 = vst [vmem:[%s444 + $0x20] sm:%s436] %v453
          $region30: #{jsc_toy_forward.1} parent=24 // loop_footer
            %s442 = sadd.s32 1, %s438
          $region31: #{jsc_toy_forward.1} parent=24 // loop_footer_branch
            %437 = sbr.rel target = $region27
          $region32: #{jsc_toy_forward.1} parent=24 // loop_exit
            _
        $region25: #{jsc_toy_forward.1} parent=16 // pred_fallthru
          _
      $region17: #{jsc_toy_forward.1} parent=12 // pred_fallthru
        _
      %477 = vnop
    $region13: #{jsc_toy_forward.1} parent=1 // pred_fallthru
      _
    // Predicated region
    $region48: #{jsc_toy_forward.1} parent=1 // pred_check
      _
    $region49: #{jsc_toy_forward.1} parent=1 // pred_check_branch
      %479 = sbr.rel (0) target = $region51
    $region50: #{jsc_toy_forward.1} parent=1 // pred_region
      _
    $region51: #{jsc_toy_forward.1} parent=1 // pred_fallthru
      _

</llo_original>
